<compile_context>
chip_gen: v7x
topology: tpu7x:2x2x1
jax: 0.10.0
libtpu: 0.0.40
codegen_flags: <defaults>
</compile_context>

<pallas_src>
import math

import jax
import jax.numpy as jnp
from jax import lax
from jax.experimental import pallas as pl
from jax.experimental.pallas import tpu as pltpu

# Problem sizes (small, consistent with the module's forward).
M = 8            # number of query rows   (x1)
N = 16           # number of key/value rows (x2, x3)
D_IN_Q = 192     # x1 feature dim
D_IN_K = 192     # x2 feature dim
D_IN_V = 384     # x3 feature dim
D_QK = 256       # q/k head dim (see TODO above)
D_V = 256        # value / output dim
DROP_P = 0.1
DROP_THRESHOLD = int(DROP_P * 2**32)   # keep iff u32 bits >= threshold  (P[keep]=0.9)
TRAINING = True  # PyTorch nn.Module defaults to training mode -> dropout active


def attn_kernel(x1_ref, x2_ref, x3_ref,
                wq_ref, bq_ref, wk_ref, bk_ref, wv_ref, bv_ref,
                drop_bits_ref, out_ref):
    # --- three linear projections (bf16 operands, f32 MXU accumulation) ---
    q = jnp.dot(x1_ref[...], wq_ref[...],
                preferred_element_type=jnp.float32) + bq_ref[...]
    k = jnp.dot(x2_ref[...], wk_ref[...],
                preferred_element_type=jnp.float32) + bk_ref[...]
    v = jnp.dot(x3_ref[...], wv_ref[...],
                preferred_element_type=jnp.float32) + bv_ref[...]

    # --- attention logits ---
    # 1/sqrt(256) has already been folded into wq/bq at init, so q is pre-scaled.
    # Contract on the shared head dim directly (no k.T -> no XLU vxpose).
    att = lax.dot_general(q, k,
                          dimension_numbers=(((1,), (1,)), ((), ())),
                          preferred_element_type=jnp.float32)      # (M, N)

    # --- softmax over last dim (numerically stable) ---
    att = att - jnp.max(att, axis=-1, keepdims=True)
    p = jnp.exp(att)
    att = p * pl.reciprocal(jnp.sum(p, axis=-1, keepdims=True), approx=False)

    # --- dropout (training mode): integer-domain keep test, single cmp+select ---
    if TRAINING:
        keep = drop_bits_ref[...] >= jnp.uint32(DROP_THRESHOLD)
        att = jnp.where(keep, att * (1.0 / (1.0 - DROP_P)), 0.0)

    # --- weighted sum of values (lane-dense 256-wide f32 output) ---
    out_ref[...] = jnp.dot(att, v, preferred_element_type=jnp.float32)


def model_forward(x1, x2, x3, wq, bq, wk, bk, wv, bv, drop_bits):
    # Single grid-less call: everything fits comfortably in VMEM (<0.5 MiB),
    # so adding a grid would only add per-step overhead in this DMA-bound regime.
    # If this op were called repeatedly, the bf16 weights could additionally be
    # pinned VMEM-resident across calls (cross-call prefetch) to skip the
    # per-call HBM->VMEM weight DMA; for a single invocation it buys nothing.
    vmem = pl.BlockSpec(memory_space=pltpu.MemorySpace.VMEM)
    return pl.pallas_call(
        attn_kernel,
        out_shape=jax.ShapeDtypeStruct((x1.shape[0], D_V), jnp.float32),
        in_specs=[vmem, vmem, vmem,           # x1, x2, x3 (bf16)
                  vmem, vmem,                 # wq (bf16), bq (f32)
                  vmem, vmem,                 # wk (bf16), bk (f32)
                  vmem, vmem,                 # wv (bf16), bv (f32)
                  vmem],                      # dropout bits (u32)
        out_specs=vmem,
    )(x1.astype(jnp.bfloat16), x2.astype(jnp.bfloat16), x3.astype(jnp.bfloat16),
      wq, bq, wk, bk, wv, bv, drop_bits)


def init_params(key):
    """torch.nn.Linear-style init U(-1/sqrt(fan_in), 1/sqrt(fan_in)).

    One-time host-side transforms (per perf feedback):
      * fold the 1/sqrt(256) attention scale into wq / bq,
      * store weights as bf16 (halves weight HBM traffic; MXU-native dtype),
        biases stay f32 (added to the f32 accumulator).
    """
    ks = jax.random.split(key, 6)

    def lin(kw, kb, fan_in, fan_out):
        bound = 1.0 / math.sqrt(fan_in)
        w = jax.random.uniform(kw, (fan_in, fan_out), jnp.float32, -bound, bound)
        b = jax.random.uniform(kb, (1, fan_out), jnp.float32, -bound, bound)
        return w, b

    wq, bq = lin(ks[0], ks[1], D_IN_Q, D_QK)
    wk, bk = lin(ks[2], ks[3], D_IN_K, D_QK)
    wv, bv = lin(ks[4], ks[5], D_IN_V, D_V)

    scale = 1.0 / math.sqrt(256.0)
    wq = wq * scale
    bq = bq * scale

    wq = wq.astype(jnp.bfloat16)
    wk = wk.astype(jnp.bfloat16)
    wv = wv.astype(jnp.bfloat16)
    return wq, bq, wk, bk, wv, bv


if __name__ == "__main__":
    root = jax.random.PRNGKey(0)
    k_params, k1, k2, k3, k_drop = jax.random.split(root, 5)

    wq, bq, wk, bk, wv, bv = init_params(k_params)

    x1 = jax.random.normal(k1, (M, D_IN_Q), jnp.float32)
    x2 = jax.random.normal(k2, (N, D_IN_K), jnp.float32)
    x3 = jax.random.normal(k3, (N, D_IN_V), jnp.float32)

    # Dropout mask bits drawn host-side (see TODO at top).
    drop_bits = jax.random.bits(k_drop, (M, N), dtype=jnp.uint32)

    out = model_forward(x1, x2, x3, wq, bq, wk, bk, wv, bv, drop_bits)
    out = jax.block_until_ready(out)

    assert out.shape == (M, D_V) and out.dtype == jnp.float32
    assert bool(jnp.all(jnp.isfinite(out)))
    print("KERNEL_OK")
</pallas_src>

<mosaic_0001>
module attributes {stable_mosaic.version = 11 : i64} {
  func.func @attn_kernel(%arg0: memref<8x192xbf16, #tpu.memory_space<vmem>>, %arg1: memref<16x192xbf16, #tpu.memory_space<vmem>>, %arg2: memref<16x384xbf16, #tpu.memory_space<vmem>>, %arg3: memref<192x256xbf16, #tpu.memory_space<vmem>>, %arg4: memref<1x256xf32, #tpu.memory_space<vmem>>, %arg5: memref<192x256xbf16, #tpu.memory_space<vmem>>, %arg6: memref<1x256xf32, #tpu.memory_space<vmem>>, %arg7: memref<384x256xbf16, #tpu.memory_space<vmem>>, %arg8: memref<1x256xf32, #tpu.memory_space<vmem>>, %arg9: memref<8x16xi32, #tpu.memory_space<vmem>>, %arg10: memref<8x256xf32, #tpu.memory_space<vmem>>) attributes {dimension_semantics = [], scalar_prefetch = 0 : i64, scratch_operands = 0 : i64, tpu.core_type = #tpu.core_type<tc>} {
    %c0 = arith.constant 0 : index
    %c0_0 = arith.constant 0 : index
    %0 = vector.load %arg0[%c0, %c0_0] : memref<8x192xbf16, #tpu.memory_space<vmem>>, vector<8x192xbf16>
    %c0_1 = arith.constant 0 : index
    %c0_2 = arith.constant 0 : index
    %1 = vector.load %arg3[%c0_1, %c0_2] : memref<192x256xbf16, #tpu.memory_space<vmem>>, vector<192x256xbf16>
    %cst = arith.constant dense<0.000000e+00> : vector<8x256xf32>
    %2 = tpu.matmul %0, %1, %cst {dimension_numbers = #tpu.dot_dimension_numbers<[1], [0], [0], [1], [0, 0, 1, 1], [], []>} : vector<8x192xbf16>, vector<192x256xbf16>, vector<8x256xf32> -> vector<8x256xf32>
    %c0_3 = arith.constant 0 : index
    %c0_4 = arith.constant 0 : index
    %3 = vector.load %arg4[%c0_3, %c0_4] : memref<1x256xf32, #tpu.memory_space<vmem>>, vector<1x256xf32>
    %4 = vector.broadcast %3 : vector<1x256xf32> to vector<8x256xf32>
    %5 = arith.addf %2, %4 : vector<8x256xf32>
    %c0_5 = arith.constant 0 : index
    %c0_6 = arith.constant 0 : index
    %6 = vector.load %arg1[%c0_5, %c0_6] : memref<16x192xbf16, #tpu.memory_space<vmem>>, vector<16x192xbf16>
    %c0_7 = arith.constant 0 : index
    %c0_8 = arith.constant 0 : index
    %7 = vector.load %arg5[%c0_7, %c0_8] : memref<192x256xbf16, #tpu.memory_space<vmem>>, vector<192x256xbf16>
    %cst_9 = arith.constant dense<0.000000e+00> : vector<16x256xf32>
    %8 = tpu.matmul %6, %7, %cst_9 {dimension_numbers = #tpu.dot_dimension_numbers<[1], [0], [0], [1], [0, 0, 1, 1], [], []>} : vector<16x192xbf16>, vector<192x256xbf16>, vector<16x256xf32> -> vector<16x256xf32>
    %c0_10 = arith.constant 0 : index
    %c0_11 = arith.constant 0 : index
    %9 = vector.load %arg6[%c0_10, %c0_11] : memref<1x256xf32, #tpu.memory_space<vmem>>, vector<1x256xf32>
    %10 = vector.broadcast %9 : vector<1x256xf32> to vector<16x256xf32>
    %11 = arith.addf %8, %10 : vector<16x256xf32>
    %c0_12 = arith.constant 0 : index
    %c0_13 = arith.constant 0 : index
    %12 = vector.load %arg2[%c0_12, %c0_13] : memref<16x384xbf16, #tpu.memory_space<vmem>>, vector<16x384xbf16>
    %c0_14 = arith.constant 0 : index
    %c0_15 = arith.constant 0 : index
    %13 = vector.load %arg7[%c0_14, %c0_15] : memref<384x256xbf16, #tpu.memory_space<vmem>>, vector<384x256xbf16>
    %cst_16 = arith.constant dense<0.000000e+00> : vector<16x256xf32>
    %14 = tpu.matmul %12, %13, %cst_16 {dimension_numbers = #tpu.dot_dimension_numbers<[1], [0], [0], [1], [0, 0, 1, 1], [], []>} : vector<16x384xbf16>, vector<384x256xbf16>, vector<16x256xf32> -> vector<16x256xf32>
    %c0_17 = arith.constant 0 : index
    %c0_18 = arith.constant 0 : index
    %15 = vector.load %arg8[%c0_17, %c0_18] : memref<1x256xf32, #tpu.memory_space<vmem>>, vector<1x256xf32>
    %16 = vector.broadcast %15 : vector<1x256xf32> to vector<16x256xf32>
    %17 = arith.addf %14, %16 : vector<16x256xf32>
    %cst_19 = arith.constant dense<0.000000e+00> : vector<8x16xf32>
    %18 = tpu.matmul %5, %11, %cst_19 {dimension_numbers = #tpu.dot_dimension_numbers<[1], [1], [0], [0], [0, 0, 1, 0], [], []>} : vector<8x256xf32>, vector<16x256xf32>, vector<8x16xf32> -> vector<8x16xf32>
    %cst_20 = arith.constant dense<0xFF800000> : vector<8xf32>
    %19 = vector.multi_reduction <maximumf>, %18, %cst_20 [1] : vector<8x16xf32> to vector<8xf32>
    %20 = vector.shape_cast %19 : vector<8xf32> to vector<8x1xf32>
    %21 = vector.broadcast %20 : vector<8x1xf32> to vector<8x16xf32>
    %22 = arith.subf %18, %21 : vector<8x16xf32>
    %23 = math.exp %22 : vector<8x16xf32>
    %cst_21 = arith.constant dense<0.000000e+00> : vector<8xf32>
    %24 = vector.multi_reduction <add>, %23, %cst_21 [1] : vector<8x16xf32> to vector<8xf32>
    %25 = vector.shape_cast %24 : vector<8xf32> to vector<8x1xf32>
    %26 = tpu.reciprocal %25 : vector<8x1xf32> -> vector<8x1xf32>
    %27 = vector.broadcast %26 : vector<8x1xf32> to vector<8x16xf32>
    %28 = arith.mulf %23, %27 : vector<8x16xf32>
    %c0_22 = arith.constant 0 : index
    %c0_23 = arith.constant 0 : index
    %29 = vector.load %arg9[%c0_22, %c0_23] : memref<8x16xi32, #tpu.memory_space<vmem>>, vector<8x16xi32>
    %c429496729_i32 = arith.constant 429496729 : i32
    %30 = vector.broadcast %c429496729_i32 : i32 to vector<8x16xi32>
    %31 = arith.cmpi uge, %29, %30 : vector<8x16xi32>
    %cst_24 = arith.constant 1.11111116 : f32
    %32 = vector.broadcast %cst_24 : f32 to vector<8x16xf32>
    %33 = arith.mulf %28, %32 : vector<8x16xf32>
    %cst_25 = arith.constant 0.000000e+00 : f32
    %34 = vector.broadcast %cst_25 : f32 to vector<8x16xf32>
    %35 = arith.select %31, %33, %34 : vector<8x16xi1>, vector<8x16xf32>
    %cst_26 = arith.constant dense<0.000000e+00> : vector<8x256xf32>
    %36 = tpu.matmul %35, %17, %cst_26 {dimension_numbers = #tpu.dot_dimension_numbers<[1], [0], [0], [1], [0, 0, 1, 1], [], []>} : vector<8x16xf32>, vector<16x256xf32>, vector<8x256xf32> -> vector<8x256xf32>
    %c0_27 = arith.constant 0 : index
    %c0_28 = arith.constant 0 : index
    %37 = vector.load %arg10[%c0_27, %c0_28] : memref<8x256xf32, #tpu.memory_space<vmem>>, vector<8x256xf32>
    tpu.vector_store %arg10[%c0_27, %c0_28], %36 {strides = array<i32>} : memref<8x256xf32, #tpu.memory_space<vmem>>, vector<8x256xf32>,
    return
  }
}

</mosaic_0001>

<llo_original>
// kernel: tpu_custom_call.1
$region0: #{tpu_custom_call.1}
  #allocation0 [shape = 'u32[]', space=smem, size = 0x4, offset = 0x4, fixed_abs, tag = 'smem constant byte address 0x4 - core index']
  #allocation1 [shape = 'u32[144,128]{1,0:T(1,128)}', space=vmem, size = 0x12000, scoped, tag = 'internal scratch']
  %s0 = inlined_call_operand.hbm [shape: bf16[8,192], index: 0, kind: input, shape index: {}]
  %s1 = inlined_call_operand.hbm [shape: bf16[16,192], index: 1, kind: input, shape index: {}]
  %s2 = inlined_call_operand.hbm [shape: bf16[16,384], index: 2, kind: input, shape index: {}]
  %s3 = inlined_call_operand.hbm [shape: bf16[192,256], index: 3, kind: input, shape index: {}]
  %s4 = inlined_call_operand.vmem [shape: f32[1,256], index: 4, kind: input, shape index: {}]
  %s5 = inlined_call_operand.hbm [shape: bf16[192,256], index: 5, kind: input, shape index: {}]
  %s6 = inlined_call_operand.vmem [shape: f32[1,256], index: 6, kind: input, shape index: {}]
  %s7 = inlined_call_operand.hbm [shape: bf16[384,256], index: 7, kind: input, shape index: {}]
  %s8 = inlined_call_operand.vmem [shape: f32[1,256], index: 8, kind: input, shape index: {}]
  %s9 = inlined_call_operand.vmem [shape: u32[8,16], index: 9, kind: input, shape index: {}]
  %s10 = inlined_call_operand.hbm [shape: f32[8,256], index: 10, kind: output, shape index: {}]
  %s11 = sld [smem:[#allocation0]]
  $region74: #{tpu_custom_call.1} parent=0
    _
  %s13 = ssub.s32 1, %s11
  %s14 = scalar_select 0, %s13, %s11
  $region1: #{tpu_custom_call.1} parent=0
    #allocation2 [shape = 'u8[4096]{0}', space=vmem, size = 0x1000, scoped, tag = 'input window, operand 0, single buffered']
    #allocation3 [shape = 's32[1]{0}', space=sflag, size = 0x4, scoped, tag = 'scoped memory for tpu_custom_call.1']
    #allocation4 [shape = 's32[1]{0}', space=sflag, size = 0x4, scoped, tag = 'scoped memory for tpu_custom_call.1']
    #allocation5 [shape = 'u8[8192]{0}', space=vmem, size = 0x2000, scoped, tag = 'input window, operand 1, single buffered']
    #allocation6 [shape = 's32[1]{0}', space=sflag, size = 0x4, scoped, tag = 'scoped memory for tpu_custom_call.1']
    #allocation7 [shape = 'u8[12288]{0}', space=vmem, size = 0x3000, scoped, tag = 'input window, operand 2, single buffered']
    #allocation8 [shape = 'u8[98304]{0}', space=vmem, size = 0x18000, scoped, tag = 'input window, operand 3, single buffered']
    #allocation9 [shape = 's32[1]{0}', space=sflag, size = 0x4, scoped, tag = 'scoped memory for tpu_custom_call.1']
    #allocation10 [shape = 'u8[98304]{0}', space=vmem, size = 0x18000, scoped, tag = 'input window, operand 5, single buffered']
    #allocation11 [shape = 'u8[196608]{0}', space=vmem, size = 0x30000, scoped, tag = 'input window, operand 7, single buffered']
    #allocation12 [shape = 's32[1]{0}', space=sflag, size = 0x4, scoped, tag = 'scoped memory for tpu_custom_call.1']
    #allocation13 [shape = 'u8[8192]{0}', space=vmem, size = 0x2000, scoped, tag = 'output window, operand 0, single buffered']
    %15 = vsyncpa [#allocation3], 0
    %16 = vsyncpa [#allocation6], 0
    %17 = vsyncpa [#allocation9], 0
    %18 = vsyncpa [#allocation12], 0
    %19 = vsyncpa [#allocation4], 0
    // Predicated region
    $region2: #{tpu_custom_call.1} parent=1 // pred_check
      _
    $region3: #{tpu_custom_call.1} parent=1 // pred_check_branch
      %21 = sbr.rel (0) target = $region5
    $region4: #{tpu_custom_call.1} parent=1 // pred_region
      %s23 = ssub.s32 128, 128
      %24 = vsyncadd [#allocation3], %s23
      %s26 = sshll.u32 [#allocation2], 4
      %s27 = int_to_ptr.vmem [resolvable:$true] %s26
      %29 = dma.hbm_to_vmem [thread:$0]  %s0, 128, %s27, [#allocation3]
    $region5: #{tpu_custom_call.1} parent=1 // pred_fallthru
      _
    // Predicated region
    $region6: #{tpu_custom_call.1} parent=1 // pred_check
      _
    $region7: #{tpu_custom_call.1} parent=1 // pred_check_branch
      %31 = sbr.rel (0) target = $region9
    $region8: #{tpu_custom_call.1} parent=1 // pred_region
      %s33 = ssub.s32 256, 256
      %34 = vsyncadd [#allocation6], %s33
      %s35 = sshll.u32 [#allocation5], 4
      %s36 = int_to_ptr.vmem [resolvable:$true] %s35
      %41 = dma.hbm_to_vmem [thread:$0]  %s1, 256, %s36, [#allocation6], 128, 128, 8
    $region9: #{tpu_custom_call.1} parent=1 // pred_fallthru
      _
    // Predicated region
    $region10: #{tpu_custom_call.1} parent=1 // pred_check
      _
    $region11: #{tpu_custom_call.1} parent=1 // pred_check_branch
      %43 = sbr.rel (0) target = $region13
    $region12: #{tpu_custom_call.1} parent=1 // pred_region
      %s45 = ssub.s32 384, 384
      %46 = vsyncadd [#allocation6], %s45
      %s47 = sshll.u32 [#allocation7], 4
      %s48 = int_to_ptr.vmem [resolvable:$true] %s47
      %53 = dma.hbm_to_vmem [thread:$0]  %s2, 384, %s48, [#allocation6], 192, 192, 12
    $region13: #{tpu_custom_call.1} parent=1 // pred_fallthru
      _
    // Predicated region
    $region14: #{tpu_custom_call.1} parent=1 // pred_check
      _
    $region15: #{tpu_custom_call.1} parent=1 // pred_check_branch
      %55 = sbr.rel (0) target = $region17
    $region16: #{tpu_custom_call.1} parent=1 // pred_region
      %s57 = ssub.s32 3072, 3072
      %58 = vsyncadd [#allocation9], %s57
      %s59 = sshll.u32 [#allocation8], 4
      %s60 = int_to_ptr.vmem [resolvable:$true] %s59
      %65 = dma.hbm_to_vmem [thread:$0]  %s3, 3072, %s60, [#allocation9], 128, 128, 8
    $region17: #{tpu_custom_call.1} parent=1 // pred_fallthru
      _
    // Predicated region
    $region18: #{tpu_custom_call.1} parent=1 // pred_check
      _
    $region19: #{tpu_custom_call.1} parent=1 // pred_check_branch
      %67 = sbr.rel (0) target = $region21
    $region20: #{tpu_custom_call.1} parent=1 // pred_region
      _
    $region21: #{tpu_custom_call.1} parent=1 // pred_fallthru
      _
    // Predicated region
    $region22: #{tpu_custom_call.1} parent=1 // pred_check
      _
    $region23: #{tpu_custom_call.1} parent=1 // pred_check_branch
      %69 = sbr.rel (0) target = $region25
    $region24: #{tpu_custom_call.1} parent=1 // pred_region
      %s71 = ssub.s32 3072, 3072
      %72 = vsyncadd [#allocation9], %s71
      %s73 = sshll.u32 [#allocation10], 4
      %s74 = int_to_ptr.vmem [resolvable:$true] %s73
      %79 = dma.hbm_to_vmem [thread:$0]  %s5, 3072, %s74, [#allocation9], 128, 128, 8
    $region25: #{tpu_custom_call.1} parent=1 // pred_fallthru
      _
    // Predicated region
    $region26: #{tpu_custom_call.1} parent=1 // pred_check
      _
    $region27: #{tpu_custom_call.1} parent=1 // pred_check_branch
      %81 = sbr.rel (0) target = $region29
    $region28: #{tpu_custom_call.1} parent=1 // pred_region
      _
    $region29: #{tpu_custom_call.1} parent=1 // pred_fallthru
      _
    // Predicated region
    $region30: #{tpu_custom_call.1} parent=1 // pred_check
      _
    $region31: #{tpu_custom_call.1} parent=1 // pred_check_branch
      %83 = sbr.rel (0) target = $region33
    $region32: #{tpu_custom_call.1} parent=1 // pred_region
      %s85 = ssub.s32 6144, 6144
      %86 = vsyncadd [#allocation12], %s85
      %s87 = sshll.u32 [#allocation11], 4
      %s88 = int_to_ptr.vmem [resolvable:$true] %s87
      %93 = dma.hbm_to_vmem [thread:$0]  %s7, 6144, %s88, [#allocation12], 128, 128, 8
    $region33: #{tpu_custom_call.1} parent=1 // pred_fallthru
      _
    // Predicated region
    $region34: #{tpu_custom_call.1} parent=1 // pred_check
      _
    $region35: #{tpu_custom_call.1} parent=1 // pred_check_branch
      %95 = sbr.rel (0) target = $region37
    $region36: #{tpu_custom_call.1} parent=1 // pred_region
      _
    $region37: #{tpu_custom_call.1} parent=1 // pred_fallthru
      _
    // Predicated region
    $region38: #{tpu_custom_call.1} parent=1 // pred_check
      _
    $region39: #{tpu_custom_call.1} parent=1 // pred_check_branch
      %97 = sbr.rel (0) target = $region41
    $region40: #{tpu_custom_call.1} parent=1 // pred_region
      _
    $region41: #{tpu_custom_call.1} parent=1 // pred_fallthru
      _
    // Predicated region
    $region42: #{tpu_custom_call.1} parent=1 // pred_check
      _
    $region43: #{tpu_custom_call.1} parent=1 // pred_check_branch
      %99 = sbr.rel (0) target = $region45
    $region44: #{tpu_custom_call.1} parent=1 // pred_region
      %100 = dma.done [#allocation3], 128
    $region45: #{tpu_custom_call.1} parent=1 // pred_fallthru
      _
    // Predicated region
    $region46: #{tpu_custom_call.1} parent=1 // pred_check
      _
    $region47: #{tpu_custom_call.1} parent=1 // pred_check_branch
      %102 = sbr.rel (0) target = $region49
    $region48: #{tpu_custom_call.1} parent=1 // pred_region
      %103 = dma.done [#allocation6], 256
    $region49: #{tpu_custom_call.1} parent=1 // pred_fallthru
      _
    // Predicated region
    $region50: #{tpu_custom_call.1} parent=1 // pred_check
      _
    $region51: #{tpu_custom_call.1} parent=1 // pred_check_branch
      %105 = sbr.rel (0) target = $region53
    $region52: #{tpu_custom_call.1} parent=1 // pred_region
      %106 = dma.done [#allocation6], 384
    $region53: #{tpu_custom_call.1} parent=1 // pred_fallthru
      _
    // Predicated region
    $region54: #{tpu_custom_call.1} parent=1 // pred_check
      _
    $region55: #{tpu_custom_call.1} parent=1 // pred_check_branch
      %108 = sbr.rel (0) target = $region57
    $region56: #{tpu_custom_call.1} parent=1 // pred_region
      %109 = dma.done [#allocation9], 3072
    $region57: #{tpu_custom_call.1} parent=1 // pred_fallthru
      _
    // Predicated region
    $region58: #{tpu_custom_call.1} parent=1 // pred_check
      _
    $region59: #{tpu_custom_call.1} parent=1 // pred_check_branch
      %111 = sbr.rel (0) target = $region61
    $region60: #{tpu_custom_call.1} parent=1 // pred_region
      %112 = dma.done [#allocation9], 3072
    $region61: #{tpu_custom_call.1} parent=1 // pred_fallthru
      _
    // Predicated region
    $region62: #{tpu_custom_call.1} parent=1 // pred_check
      _
    $region63: #{tpu_custom_call.1} parent=1 // pred_check_branch
      %114 = sbr.rel (0) target = $region65
    $region64: #{tpu_custom_call.1} parent=1 // pred_region
      %115 = dma.done [#allocation12], 6144
    $region65: #{tpu_custom_call.1} parent=1 // pred_fallthru
      _
    %v117 = vld [vmem:[#allocation2] sm:$0xff]
    %v118 = vld [vmem:[#allocation8] sm:$0xff]
    %v119 = vld [vmem:[#allocation8 + $0x8] sm:$0xff]
    %v120 = vld [vmem:[#allocation8 + $0x10] sm:$0xff]
    %v121 = vld [vmem:[#allocation8 + $0x18] sm:$0xff]
    %v122 = vld [vmem:[#allocation8 + $0x20] sm:$0xff]
    %v123 = vld [vmem:[#allocation8 + $0x28] sm:$0xff]
    %v124 = vld [vmem:[#allocation8 + $0x30] sm:$0xff]
    %v125 = vld [vmem:[#allocation8 + $0x38] sm:$0xff]
    %v126 = vld [vmem:[#allocation8 + $0x40] sm:$0xff]
    %v127 = vld [vmem:[#allocation8 + $0x48] sm:$0xff]
    %v128 = vld [vmem:[#allocation8 + $0x50] sm:$0xff]
    %v129 = vld [vmem:[#allocation8 + $0x58] sm:$0xff]
    %v130 = vld [vmem:[#allocation8 + $0x60] sm:$0xff]
    %v131 = vld [vmem:[#allocation8 + $0x68] sm:$0xff]
    %v132 = vld [vmem:[#allocation8 + $0x70] sm:$0xff]
    %v133 = vld [vmem:[#allocation8 + $0x78] sm:$0xff]
    %v134 = vld [vmem:[#allocation8 + $0x80] sm:$0xff]
    %v135 = vld [vmem:[#allocation8 + $0x88] sm:$0xff]
    %v136 = vld [vmem:[#allocation8 + $0x90] sm:$0xff]
    %v137 = vld [vmem:[#allocation8 + $0x98] sm:$0xff]
    %v138 = vld [vmem:[#allocation8 + $0xa0] sm:$0xff]
    %v139 = vld [vmem:[#allocation8 + $0xa8] sm:$0xff]
    %v140 = vld [vmem:[#allocation8 + $0xb0] sm:$0xff]
    %v141 = vld [vmem:[#allocation8 + $0xb8] sm:$0xff]
    %v142 = vld [vmem:[%s4] sm:$0x3]
    %v144 = vlaneseq
    %v145 = vshrl.u32 %v144, 7
    %v146 = vsub.s32 0, %v145
    %v147 = vrot.slane %v142, %v146
    %v148 = vlaneseq
    %v149 = vshrl.u32 %v148, 7
    %v150 = vsub.s32 1, %v149
    %v151 = vrot.slane %v142, %v150
    %v155 = vunpack.c.l.b16 %v117
    %v156 = vunpack.c.h.b16 %v117
    %v157 = vpack.c.b16 %v155, %v155
    %v158 = vpack.c.b16 %v156, %v156
    %v184 = vunpack.c.l.b16 %v118
    %v185 = vunpack.c.h.b16 %v118
    %v186 = vunpack.c.l.b16 %v119
    %v187 = vunpack.c.h.b16 %v119
    %v188 = vunpack.c.l.b16 %v120
    %v189 = vunpack.c.h.b16 %v120
    %v190 = vunpack.c.l.b16 %v121
    %v191 = vunpack.c.h.b16 %v121
    %v192 = vunpack.c.l.b16 %v122
    %v193 = vunpack.c.h.b16 %v122
    %v194 = vunpack.c.l.b16 %v123
    %v195 = vunpack.c.h.b16 %v123
    %v196 = vunpack.c.l.b16 %v124
    %v197 = vunpack.c.h.b16 %v124
    %v198 = vunpack.c.l.b16 %v125
    %v199 = vunpack.c.h.b16 %v125
    %v200 = vunpack.c.l.b16 %v126
    %v201 = vunpack.c.h.b16 %v126
    %v202 = vunpack.c.l.b16 %v127
    %v203 = vunpack.c.h.b16 %v127
    %v204 = vunpack.c.l.b16 %v128
    %v205 = vunpack.c.h.b16 %v128
    %v206 = vunpack.c.l.b16 %v129
    %v207 = vunpack.c.h.b16 %v129
    %v208 = vunpack.c.l.b16 %v130
    %v209 = vunpack.c.h.b16 %v130
    %v210 = vunpack.c.l.b16 %v131
    %v211 = vunpack.c.h.b16 %v131
    %v212 = vunpack.c.l.b16 %v132
    %v213 = vunpack.c.h.b16 %v132
    %v214 = vunpack.c.l.b16 %v133
    %v215 = vunpack.c.h.b16 %v133
    %v216 = vunpack.c.l.b16 %v134
    %v217 = vunpack.c.h.b16 %v134
    %v218 = vunpack.c.l.b16 %v135
    %v219 = vunpack.c.h.b16 %v135
    %v220 = vunpack.c.l.b16 %v136
    %v221 = vunpack.c.h.b16 %v136
    %v222 = vunpack.c.l.b16 %v137
    %v223 = vunpack.c.h.b16 %v137
    %v224 = vunpack.c.l.b16 %v138
    %v225 = vunpack.c.h.b16 %v138
    %v226 = vunpack.c.l.b16 %v139
    %v227 = vunpack.c.h.b16 %v139
    %v228 = vunpack.c.l.b16 %v140
    %v229 = vunpack.c.h.b16 %v140
    %v230 = vunpack.c.l.b16 %v141
    %v231 = vunpack.c.h.b16 %v141
    %v232 = vpack.c.b16 %v186, %v184
    %v233 = vpack.c.b16 %v187, %v185
    %v234 = vpack.c.b16 %v190, %v188
    %v235 = vpack.c.b16 %v191, %v189
    %v236 = vpack.c.b16 %v194, %v192
    %v237 = vpack.c.b16 %v195, %v193
    %v238 = vpack.c.b16 %v198, %v196
    %v239 = vpack.c.b16 %v199, %v197
    %v240 = vpack.c.b16 %v202, %v200
    %v241 = vpack.c.b16 %v203, %v201
    %v242 = vpack.c.b16 %v206, %v204
    %v243 = vpack.c.b16 %v207, %v205
    %v244 = vpack.c.b16 %v210, %v208
    %v245 = vpack.c.b16 %v211, %v209
    %v246 = vpack.c.b16 %v214, %v212
    %v247 = vpack.c.b16 %v215, %v213
    %v248 = vpack.c.b16 %v218, %v216
    %v249 = vpack.c.b16 %v219, %v217
    %v250 = vpack.c.b16 %v222, %v220
    %v251 = vpack.c.b16 %v223, %v221
    %v252 = vpack.c.b16 %v226, %v224
    %v253 = vpack.c.b16 %v227, %v225
    %v254 = vpack.c.b16 %v230, %v228
    %v255 = vpack.c.b16 %v231, %v229
    %vm280 = vcmask 523264
    %v282 = vsel %vm280, %v158, 0
    %284 = vmatprep.subr.bf16.mxu0 %v233
    %285 = vmatpush1.bf16.msra.mxu0 %v232
    %286 = vmatprep.subr.bf16.mxu0 %v235
    %287 = vmatpush1.bf16.msra.mxu0 %v234
    %288 = vmatprep.subr.bf16.mxu0 %v237
    %289 = vmatpush1.bf16.msra.mxu0 %v236
    %290 = vmatprep.subr.bf16.mxu0 %v239
    %291 = vmatpush1.bf16.msra.mxu0 %v238
    %292 = vmatprep.subr.bf16.mxu0 %v241
    %293 = vmatpush1.bf16.msra.mxu0 %v240
    %294 = vmatprep.subr.bf16.mxu0 %v243
    %295 = vmatpush1.bf16.msra.mxu0 %v242
    %296 = vmatprep.subr.bf16.mxu0 %v245
    %297 = vmatpush1.bf16.msra.mxu0 %v244
    %298 = vmatprep.subr.bf16.mxu0 %v247
    %299 = vmatpush1.bf16.msra.mxu0 %v246
    %300 = vmatprep.subr.bf16.mxu0 %v249
    %301 = vmatpush1.bf16.msra.mxu0 %v248
    %302 = vmatprep.subr.bf16.mxu0 %v251
    %303 = vmatpush1.bf16.msra.mxu0 %v250
    %304 = vmatprep.subr.bf16.mxu0 %v253
    %305 = vmatpush1.bf16.msra.mxu0 %v252
    %306 = vmatprep.subr.bf16.mxu0 %v255
    %307 = vmatpush1.bf16.msra.mxu0 %v254
    %308 = vmatprep.subr.bf16.mxu0 0
    %309 = vmatpush1.bf16.msra.mxu0 0
    %310 = vmatprep.subr.bf16.mxu0 0
    %311 = vmatpush1.bf16.msra.mxu0 0
    %312 = vmatprep.subr.bf16.mxu0 0
    %313 = vmatpush1.bf16.msra.mxu0 0
    %314 = vmatprep.subr.bf16.mxu0 0
    %315 = vmatpush1.bf16.msra.mxu0 0
    %316 = vmatprep.mubr.bf16.mxu0 %v282
    %317 = vmatmul.mubr.bf16.gmra.mrb[0].mxu0 %v157
    %v318 = vpop.f32.mrb[0].mxu0
    %v319 = vadd.f32 %v147, %v318
    %v320 = vpop.f32.mrb[0].mxu0
    %v321 = vadd.f32 %v151, %v320
    %v322 = vpop.f32.mrb[0].mxu0
    %v323 = vpop.f32.mrb[0].mxu0
    %324 = vdwg.mxu0
    %v325 = vld [vmem:[#allocation5] sm:$0xff]
    %v326 = vld [vmem:[#allocation5 + $0x8] sm:$0xff]
    %v327 = vld [vmem:[#allocation10] sm:$0xff]
    %v328 = vld [vmem:[#allocation10 + $0x8] sm:$0xff]
    %v329 = vld [vmem:[#allocation10 + $0x10] sm:$0xff]
    %v330 = vld [vmem:[#allocation10 + $0x18] sm:$0xff]
    %v331 = vld [vmem:[#allocation10 + $0x20] sm:$0xff]
    %v332 = vld [vmem:[#allocation10 + $0x28] sm:$0xff]
    %v333 = vld [vmem:[#allocation10 + $0x30] sm:$0xff]
    %v334 = vld [vmem:[#allocation10 + $0x38] sm:$0xff]
    %v335 = vld [vmem:[#allocation10 + $0x40] sm:$0xff]
    %v336 = vld [vmem:[#allocation10 + $0x48] sm:$0xff]
    %v337 = vld [vmem:[#allocation10 + $0x50] sm:$0xff]
    %v338 = vld [vmem:[#allocation10 + $0x58] sm:$0xff]
    %v339 = vld [vmem:[#allocation10 + $0x60] sm:$0xff]
    %v340 = vld [vmem:[#allocation10 + $0x68] sm:$0xff]
    %v341 = vld [vmem:[#allocation10 + $0x70] sm:$0xff]
    %v342 = vld [vmem:[#allocation10 + $0x78] sm:$0xff]
    %v343 = vld [vmem:[#allocation10 + $0x80] sm:$0xff]
    %v344 = vld [vmem:[#allocation10 + $0x88] sm:$0xff]
    %v345 = vld [vmem:[#allocation10 + $0x90] sm:$0xff]
    %v346 = vld [vmem:[#allocation10 + $0x98] sm:$0xff]
    %v347 = vld [vmem:[#allocation10 + $0xa0] sm:$0xff]
    %v348 = vld [vmem:[#allocation10 + $0xa8] sm:$0xff]
    %v349 = vld [vmem:[#allocation10 + $0xb0] sm:$0xff]
    %v350 = vld [vmem:[#allocation10 + $0xb8] sm:$0xff]
    %v351 = vld [vmem:[%s6] sm:$0x3]
    %v353 = vlaneseq
    %v354 = vshrl.u32 %v353, 7
    %v355 = vsub.s32 0, %v354
    %v356 = vrot.slane %v351, %v355
    %v357 = vlaneseq
    %v358 = vshrl.u32 %v357, 7
    %v359 = vsub.s32 1, %v358
    %v360 = vrot.slane %v351, %v359
    %v365 = vunpack.c.l.b16 %v325
    %v366 = vunpack.c.h.b16 %v325
    %v367 = vunpack.c.l.b16 %v326
    %v368 = vunpack.c.h.b16 %v326
    %v369 = vpack.c.b16 %v367, %v365
    %v370 = vpack.c.b16 %v368, %v366
    %v396 = vunpack.c.l.b16 %v327
    %v397 = vunpack.c.h.b16 %v327
    %v398 = vunpack.c.l.b16 %v328
    %v399 = vunpack.c.h.b16 %v328
    %v400 = vunpack.c.l.b16 %v329
    %v401 = vunpack.c.h.b16 %v329
    %v402 = vunpack.c.l.b16 %v330
    %v403 = vunpack.c.h.b16 %v330
    %v404 = vunpack.c.l.b16 %v331
    %v405 = vunpack.c.h.b16 %v331
    %v406 = vunpack.c.l.b16 %v332
    %v407 = vunpack.c.h.b16 %v332
    %v408 = vunpack.c.l.b16 %v333
    %v409 = vunpack.c.h.b16 %v333
    %v410 = vunpack.c.l.b16 %v334
    %v411 = vunpack.c.h.b16 %v334
    %v412 = vunpack.c.l.b16 %v335
    %v413 = vunpack.c.h.b16 %v335
    %v414 = vunpack.c.l.b16 %v336
    %v415 = vunpack.c.h.b16 %v336
    %v416 = vunpack.c.l.b16 %v337
    %v417 = vunpack.c.h.b16 %v337
    %v418 = vunpack.c.l.b16 %v338
    %v419 = vunpack.c.h.b16 %v338
    %v420 = vunpack.c.l.b16 %v339
    %v421 = vunpack.c.h.b16 %v339
    %v422 = vunpack.c.l.b16 %v340
    %v423 = vunpack.c.h.b16 %v340
    %v424 = vunpack.c.l.b16 %v341
    %v425 = vunpack.c.h.b16 %v341
    %v426 = vunpack.c.l.b16 %v342
    %v427 = vunpack.c.h.b16 %v342
    %v428 = vunpack.c.l.b16 %v343
    %v429 = vunpack.c.h.b16 %v343
    %v430 = vunpack.c.l.b16 %v344
    %v431 = vunpack.c.h.b16 %v344
    %v432 = vunpack.c.l.b16 %v345
    %v433 = vunpack.c.h.b16 %v345
    %v434 = vunpack.c.l.b16 %v346
    %v435 = vunpack.c.h.b16 %v346
    %v436 = vunpack.c.l.b16 %v347
    %v437 = vunpack.c.h.b16 %v347
    %v438 = vunpack.c.l.b16 %v348
    %v439 = vunpack.c.h.b16 %v348
    %v440 = vunpack.c.l.b16 %v349
    %v441 = vunpack.c.h.b16 %v349
    %v442 = vunpack.c.l.b16 %v350
    %v443 = vunpack.c.h.b16 %v350
    %v444 = vpack.c.b16 %v398, %v396
    %v445 = vpack.c.b16 %v399, %v397
    %v446 = vpack.c.b16 %v402, %v400
    %v447 = vpack.c.b16 %v403, %v401
    %v448 = vpack.c.b16 %v406, %v404
    %v449 = vpack.c.b16 %v407, %v405
    %v450 = vpack.c.b16 %v410, %v408
    %v451 = vpack.c.b16 %v411, %v409
    %v452 = vpack.c.b16 %v414, %v412
    %v453 = vpack.c.b16 %v415, %v413
    %v454 = vpack.c.b16 %v418, %v416
    %v455 = vpack.c.b16 %v419, %v417
    %v456 = vpack.c.b16 %v422, %v420
    %v457 = vpack.c.b16 %v423, %v421
    %v458 = vpack.c.b16 %v426, %v424
    %v459 = vpack.c.b16 %v427, %v425
    %v460 = vpack.c.b16 %v430, %v428
    %v461 = vpack.c.b16 %v431, %v429
    %v462 = vpack.c.b16 %v434, %v432
    %v463 = vpack.c.b16 %v435, %v433
    %v464 = vpack.c.b16 %v438, %v436
    %v465 = vpack.c.b16 %v439, %v437
    %v466 = vpack.c.b16 %v442, %v440
    %v467 = vpack.c.b16 %v443, %v441
    %v493 = vsel %vm280, %v370, 0
    %495 = vmatprep.subr.bf16.mxu0 %v445
    %496 = vmatpush1.bf16.msra.mxu0 %v444
    %497 = vmatprep.subr.bf16.mxu0 %v447
    %498 = vmatpush1.bf16.msra.mxu0 %v446
    %499 = vmatprep.subr.bf16.mxu0 %v449
    %500 = vmatpush1.bf16.msra.mxu0 %v448
    %501 = vmatprep.subr.bf16.mxu0 %v451
    %502 = vmatpush1.bf16.msra.mxu0 %v450
    %503 = vmatprep.subr.bf16.mxu0 %v453
    %504 = vmatpush1.bf16.msra.mxu0 %v452
    %505 = vmatprep.subr.bf16.mxu0 %v455
    %506 = vmatpush1.bf16.msra.mxu0 %v454
    %507 = vmatprep.subr.bf16.mxu0 %v457
    %508 = vmatpush1.bf16.msra.mxu0 %v456
    %509 = vmatprep.subr.bf16.mxu0 %v459
    %510 = vmatpush1.bf16.msra.mxu0 %v458
    %511 = vmatprep.subr.bf16.mxu0 %v461
    %512 = vmatpush1.bf16.msra.mxu0 %v460
    %513 = vmatprep.subr.bf16.mxu0 %v463
    %514 = vmatpush1.bf16.msra.mxu0 %v462
    %515 = vmatprep.subr.bf16.mxu0 %v465
    %516 = vmatpush1.bf16.msra.mxu0 %v464
    %517 = vmatprep.subr.bf16.mxu0 %v467
    %518 = vmatpush1.bf16.msra.mxu0 %v466
    %519 = vmatprep.subr.bf16.mxu0 0
    %520 = vmatpush1.bf16.msra.mxu0 0
    %521 = vmatprep.subr.bf16.mxu0 0
    %522 = vmatpush1.bf16.msra.mxu0 0
    %523 = vmatprep.subr.bf16.mxu0 0
    %524 = vmatpush1.bf16.msra.mxu0 0
    %525 = vmatprep.subr.bf16.mxu0 0
    %526 = vmatpush1.bf16.msra.mxu0 0
    %527 = vmatprep.mubr.bf16.mxu0 %v493
    %528 = vmatmul.mubr.bf16.gmra.mrb[0].mxu0 %v369
    %v529 = vpop.f32.mrb[0].mxu0
    %v530 = vadd.f32 %v356, %v529
    %v531 = vpop.f32.mrb[0].mxu0
    %v532 = vadd.f32 %v360, %v531
    %v533 = vpop.f32.mrb[0].mxu0
    %v534 = vadd.f32 %v356, %v533
    %v535 = vpop.f32.mrb[0].mxu0
    %v536 = vadd.f32 %v360, %v535
    %537 = vdwg.mxu0
    %v538 = vld [vmem:[#allocation7] sm:$0xff]
    %v539 = vld [vmem:[#allocation7 + $0x8] sm:$0xf]
    %v540 = vld [vmem:[#allocation7 + $0xc] sm:$0xff]
    %v541 = vld [vmem:[#allocation7 + $0x14] sm:$0xf]
    %v542 = vld [vmem:[#allocation11] sm:$0xff]
    %v543 = vld [vmem:[#allocation11 + $0x8] sm:$0xff]
    %v544 = vld [vmem:[#allocation11 + $0x10] sm:$0xff]
    %v545 = vld [vmem:[#allocation11 + $0x18] sm:$0xff]
    %v546 = vld [vmem:[#allocation11 + $0x20] sm:$0xff]
    %v547 = vld [vmem:[#allocation11 + $0x28] sm:$0xff]
    %v548 = vld [vmem:[#allocation11 + $0x30] sm:$0xff]
    %v549 = vld [vmem:[#allocation11 + $0x38] sm:$0xff]
    %v550 = vld [vmem:[#allocation11 + $0x40] sm:$0xff]
    %v551 = vld [vmem:[#allocation11 + $0x48] sm:$0xff]
    %v552 = vld [vmem:[#allocation11 + $0x50] sm:$0xff]
    %v553 = vld [vmem:[#allocation11 + $0x58] sm:$0xff]
    %v554 = vld [vmem:[#allocation11 + $0x60] sm:$0xff]
    %v555 = vld [vmem:[#allocation11 + $0x68] sm:$0xff]
    %v556 = vld [vmem:[#allocation11 + $0x70] sm:$0xff]
    %v557 = vld [vmem:[#allocation11 + $0x78] sm:$0xff]
    %v558 = vld [vmem:[#allocation11 + $0x80] sm:$0xff]
    %v559 = vld [vmem:[#allocation11 + $0x88] sm:$0xff]
    %v560 = vld [vmem:[#allocation11 + $0x90] sm:$0xff]
    %v561 = vld [vmem:[#allocation11 + $0x98] sm:$0xff]
    %v562 = vld [vmem:[#allocation11 + $0xa0] sm:$0xff]
    %v563 = vld [vmem:[#allocation11 + $0xa8] sm:$0xff]
    %v564 = vld [vmem:[#allocation11 + $0xb0] sm:$0xff]
    %v565 = vld [vmem:[#allocation11 + $0xb8] sm:$0xff]
    %v566 = vld [vmem:[#allocation11 + $0xc0] sm:$0xff]
    %v567 = vld [vmem:[#allocation11 + $0xc8] sm:$0xff]
    %v568 = vld [vmem:[#allocation11 + $0xd0] sm:$0xff]
    %v569 = vld [vmem:[#allocation11 + $0xd8] sm:$0xff]
    %v570 = vld [vmem:[#allocation11 + $0xe0] sm:$0xff]
    %v571 = vld [vmem:[#allocation11 + $0xe8] sm:$0xff]
    %v572 = vld [vmem:[#allocation11 + $0xf0] sm:$0xff]
    %v573 = vld [vmem:[#allocation11 + $0xf8] sm:$0xff]
    %v574 = vld [vmem:[#allocation11 + $0x100] sm:$0xff]
    %v575 = vld [vmem:[#allocation11 + $0x108] sm:$0xff]
    %v576 = vld [vmem:[#allocation11 + $0x110] sm:$0xff]
    %v577 = vld [vmem:[#allocation11 + $0x118] sm:$0xff]
    %v578 = vld [vmem:[#allocation11 + $0x120] sm:$0xff]
    %v579 = vld [vmem:[#allocation11 + $0x128] sm:$0xff]
    %v580 = vld [vmem:[#allocation11 + $0x130] sm:$0xff]
    %v581 = vld [vmem:[#allocation11 + $0x138] sm:$0xff]
    %v582 = vld [vmem:[#allocation11 + $0x140] sm:$0xff]
    %v583 = vld [vmem:[#allocation11 + $0x148] sm:$0xff]
    %v584 = vld [vmem:[#allocation11 + $0x150] sm:$0xff]
    %v585 = vld [vmem:[#allocation11 + $0x158] sm:$0xff]
    %v586 = vld [vmem:[#allocation11 + $0x160] sm:$0xff]
    %v587 = vld [vmem:[#allocation11 + $0x168] sm:$0xff]
    %v588 = vld [vmem:[#allocation11 + $0x170] sm:$0xff]
    %v589 = vld [vmem:[#allocation11 + $0x178] sm:$0xff]
    %v590 = vld [vmem:[%s8] sm:$0x3]
    %v592 = vlaneseq
    %v593 = vshrl.u32 %v592, 7
    %v594 = vsub.s32 0, %v593
    %v595 = vrot.slane %v590, %v594
    %v596 = vlaneseq
    %v597 = vshrl.u32 %v596, 7
    %v598 = vsub.s32 1, %v597
    %v599 = vrot.slane %v590, %v598
    %v606 = vunpack.c.l.b16 %v538
    %v607 = vunpack.c.h.b16 %v538
    %v608 = vunpack.c.l.b16 %v539
    %v609 = vunpack.c.l.b16 %v540
    %v610 = vunpack.c.h.b16 %v540
    %v611 = vunpack.c.l.b16 %v541
    %v612 = vpack.c.b16 %v609, %v606
    %v613 = vpack.c.b16 %v610, %v607
    %v614 = vpack.c.b16 %v611, %v608
    %v666 = vunpack.c.l.b16 %v542
    %v667 = vunpack.c.h.b16 %v542
    %v668 = vunpack.c.l.b16 %v543
    %v669 = vunpack.c.h.b16 %v543
    %v670 = vunpack.c.l.b16 %v544
    %v671 = vunpack.c.h.b16 %v544
    %v672 = vunpack.c.l.b16 %v545
    %v673 = vunpack.c.h.b16 %v545
    %v674 = vunpack.c.l.b16 %v546
    %v675 = vunpack.c.h.b16 %v546
    %v676 = vunpack.c.l.b16 %v547
    %v677 = vunpack.c.h.b16 %v547
    %v678 = vunpack.c.l.b16 %v548
    %v679 = vunpack.c.h.b16 %v548
    %v680 = vunpack.c.l.b16 %v549
    %v681 = vunpack.c.h.b16 %v549
    %v682 = vunpack.c.l.b16 %v550
    %v683 = vunpack.c.h.b16 %v550
    %v684 = vunpack.c.l.b16 %v551
    %v685 = vunpack.c.h.b16 %v551
    %v686 = vunpack.c.l.b16 %v552
    %v687 = vunpack.c.h.b16 %v552
    %v688 = vunpack.c.l.b16 %v553
    %v689 = vunpack.c.h.b16 %v553
    %v690 = vunpack.c.l.b16 %v554
    %v691 = vunpack.c.h.b16 %v554
    %v692 = vunpack.c.l.b16 %v555
    %v693 = vunpack.c.h.b16 %v555
    %v694 = vunpack.c.l.b16 %v556
    %v695 = vunpack.c.h.b16 %v556
    %v696 = vunpack.c.l.b16 %v557
    %v697 = vunpack.c.h.b16 %v557
    %v698 = vunpack.c.l.b16 %v558
    %v699 = vunpack.c.h.b16 %v558
    %v700 = vunpack.c.l.b16 %v559
    %v701 = vunpack.c.h.b16 %v559
    %v702 = vunpack.c.l.b16 %v560
    %v703 = vunpack.c.h.b16 %v560
    %v704 = vunpack.c.l.b16 %v561
    %v705 = vunpack.c.h.b16 %v561
    %v706 = vunpack.c.l.b16 %v562
    %v707 = vunpack.c.h.b16 %v562
    %v708 = vunpack.c.l.b16 %v563
    %v709 = vunpack.c.h.b16 %v563
    %v710 = vunpack.c.l.b16 %v564
    %v711 = vunpack.c.h.b16 %v564
    %v712 = vunpack.c.l.b16 %v565
    %v713 = vunpack.c.h.b16 %v565
    %v714 = vunpack.c.l.b16 %v566
    %v715 = vunpack.c.h.b16 %v566
    %v716 = vunpack.c.l.b16 %v567
    %v717 = vunpack.c.h.b16 %v567
    %v718 = vunpack.c.l.b16 %v568
    %v719 = vunpack.c.h.b16 %v568
    %v720 = vunpack.c.l.b16 %v569
    %v721 = vunpack.c.h.b16 %v569
    %v722 = vunpack.c.l.b16 %v570
    %v723 = vunpack.c.h.b16 %v570
    %v724 = vunpack.c.l.b16 %v571
    %v725 = vunpack.c.h.b16 %v571
    %v726 = vunpack.c.l.b16 %v572
    %v727 = vunpack.c.h.b16 %v572
    %v728 = vunpack.c.l.b16 %v573
    %v729 = vunpack.c.h.b16 %v573
    %v730 = vunpack.c.l.b16 %v574
    %v731 = vunpack.c.h.b16 %v574
    %v732 = vunpack.c.l.b16 %v575
    %v733 = vunpack.c.h.b16 %v575
    %v734 = vunpack.c.l.b16 %v576
    %v735 = vunpack.c.h.b16 %v576
    %v736 = vunpack.c.l.b16 %v577
    %v737 = vunpack.c.h.b16 %v577
    %v738 = vunpack.c.l.b16 %v578
    %v739 = vunpack.c.h.b16 %v578
    %v740 = vunpack.c.l.b16 %v579
    %v741 = vunpack.c.h.b16 %v579
    %v742 = vunpack.c.l.b16 %v580
    %v743 = vunpack.c.h.b16 %v580
    %v744 = vunpack.c.l.b16 %v581
    %v745 = vunpack.c.h.b16 %v581
    %v746 = vunpack.c.l.b16 %v582
    %v747 = vunpack.c.h.b16 %v582
    %v748 = vunpack.c.l.b16 %v583
    %v749 = vunpack.c.h.b16 %v583
    %v750 = vunpack.c.l.b16 %v584
    %v751 = vunpack.c.h.b16 %v584
    %v752 = vunpack.c.l.b16 %v585
    %v753 = vunpack.c.h.b16 %v585
    %v754 = vunpack.c.l.b16 %v586
    %v755 = vunpack.c.h.b16 %v586
    %v756 = vunpack.c.l.b16 %v587
    %v757 = vunpack.c.h.b16 %v587
    %v758 = vunpack.c.l.b16 %v588
    %v759 = vunpack.c.h.b16 %v588
    %v760 = vunpack.c.l.b16 %v589
    %v761 = vunpack.c.h.b16 %v589
    %v762 = vpack.c.b16 %v668, %v666
    %v763 = vpack.c.b16 %v669, %v667
    %v764 = vpack.c.b16 %v672, %v670
    %v765 = vpack.c.b16 %v673, %v671
    %v766 = vpack.c.b16 %v676, %v674
    %v767 = vpack.c.b16 %v677, %v675
    %v768 = vpack.c.b16 %v680, %v678
    %v769 = vpack.c.b16 %v681, %v679
    %v770 = vpack.c.b16 %v684, %v682
    %v771 = vpack.c.b16 %v685, %v683
    %v772 = vpack.c.b16 %v688, %v686
    %v773 = vpack.c.b16 %v689, %v687
    %v774 = vpack.c.b16 %v692, %v690
    %v775 = vpack.c.b16 %v693, %v691
    %v776 = vpack.c.b16 %v696, %v694
    %v777 = vpack.c.b16 %v697, %v695
    %v778 = vpack.c.b16 %v700, %v698
    %v779 = vpack.c.b16 %v701, %v699
    %v780 = vpack.c.b16 %v704, %v702
    %v781 = vpack.c.b16 %v705, %v703
    %v782 = vpack.c.b16 %v708, %v706
    %v783 = vpack.c.b16 %v709, %v707
    %v784 = vpack.c.b16 %v712, %v710
    %v785 = vpack.c.b16 %v713, %v711
    %v786 = vpack.c.b16 %v716, %v714
    %v787 = vpack.c.b16 %v717, %v715
    %v788 = vpack.c.b16 %v720, %v718
    %v789 = vpack.c.b16 %v721, %v719
    %v790 = vpack.c.b16 %v724, %v722
    %v791 = vpack.c.b16 %v725, %v723
    %v792 = vpack.c.b16 %v728, %v726
    %v793 = vpack.c.b16 %v729, %v727
    %v794 = vpack.c.b16 %v732, %v730
    %v795 = vpack.c.b16 %v733, %v731
    %v796 = vpack.c.b16 %v736, %v734
    %v797 = vpack.c.b16 %v737, %v735
    %v798 = vpack.c.b16 %v740, %v738
    %v799 = vpack.c.b16 %v741, %v739
    %v800 = vpack.c.b16 %v744, %v742
    %v801 = vpack.c.b16 %v745, %v743
    %v802 = vpack.c.b16 %v748, %v746
    %v803 = vpack.c.b16 %v749, %v747
    %v804 = vpack.c.b16 %v752, %v750
    %v805 = vpack.c.b16 %v753, %v751
    %v806 = vpack.c.b16 %v756, %v754
    %v807 = vpack.c.b16 %v757, %v755
    %v808 = vpack.c.b16 %v760, %v758
    %v809 = vpack.c.b16 %v761, %v759
    %858 = vmatprep.subr.bf16.mxu0 %v763
    %859 = vmatpush1.bf16.msra.mxu0 %v762
    %860 = vmatprep.subr.bf16.mxu0 %v765
    %861 = vmatpush1.bf16.msra.mxu0 %v764
    %862 = vmatprep.subr.bf16.mxu0 %v767
    %863 = vmatpush1.bf16.msra.mxu0 %v766
    %864 = vmatprep.subr.bf16.mxu0 %v769
    %865 = vmatpush1.bf16.msra.mxu0 %v768
    %866 = vmatprep.subr.bf16.mxu0 %v771
    %867 = vmatpush1.bf16.msra.mxu0 %v770
    %868 = vmatprep.subr.bf16.mxu0 %v773
    %869 = vmatpush1.bf16.msra.mxu0 %v772
    %870 = vmatprep.subr.bf16.mxu0 %v775
    %871 = vmatpush1.bf16.msra.mxu0 %v774
    %872 = vmatprep.subr.bf16.mxu0 %v777
    %873 = vmatpush1.bf16.msra.mxu0 %v776
    %874 = vmatprep.subr.bf16.mxu0 %v779
    %875 = vmatpush1.bf16.msra.mxu0 %v778
    %876 = vmatprep.subr.bf16.mxu0 %v781
    %877 = vmatpush1.bf16.msra.mxu0 %v780
    %878 = vmatprep.subr.bf16.mxu0 %v783
    %879 = vmatpush1.bf16.msra.mxu0 %v782
    %880 = vmatprep.subr.bf16.mxu0 %v785
    %881 = vmatpush1.bf16.msra.mxu0 %v784
    %882 = vmatprep.subr.bf16.mxu0 %v787
    %883 = vmatpush1.bf16.msra.mxu0 %v786
    %884 = vmatprep.subr.bf16.mxu0 %v789
    %885 = vmatpush1.bf16.msra.mxu0 %v788
    %886 = vmatprep.subr.bf16.mxu0 %v791
    %887 = vmatpush1.bf16.msra.mxu0 %v790
    %888 = vmatprep.subr.bf16.mxu0 %v793
    %889 = vmatpush1.bf16.msra.mxu0 %v792
    %890 = vmatprep.mubr.bf16.mxu0 %v613
    %891 = vmatmul.mubr.bf16.gmra.mrb[0].mxu0 %v612
    %v892 = vpop.f32.mrb[0].mxu0
    %v893 = vadd.f32 %v595, %v892
    %v894 = vpop.f32.mrb[0].mxu0
    %v895 = vadd.f32 %v599, %v894
    %v896 = vpop.f32.mrb[0].mxu0
    %v897 = vadd.f32 %v595, %v896
    %v898 = vpop.f32.mrb[0].mxu0
    %v899 = vadd.f32 %v599, %v898
    %900 = vdwg.mxu0
    %901 = vmatprep.subr.bf16.mxu0 %v795
    %902 = vmatpush1.bf16.msra.mxu0 %v794
    %903 = vmatprep.subr.bf16.mxu0 %v797
    %904 = vmatpush1.bf16.msra.mxu0 %v796
    %905 = vmatprep.subr.bf16.mxu0 %v799
    %906 = vmatpush1.bf16.msra.mxu0 %v798
    %907 = vmatprep.subr.bf16.mxu0 %v801
    %908 = vmatpush1.bf16.msra.mxu0 %v800
    %909 = vmatprep.subr.bf16.mxu0 %v803
    %910 = vmatpush1.bf16.msra.mxu0 %v802
    %911 = vmatprep.subr.bf16.mxu0 %v805
    %912 = vmatpush1.bf16.msra.mxu0 %v804
    %913 = vmatprep.subr.bf16.mxu0 %v807
    %914 = vmatpush1.bf16.msra.mxu0 %v806
    %915 = vmatprep.subr.bf16.mxu0 %v809
    %916 = vmatpush1.bf16.msra.mxu0 %v808
    %917 = vmatprep.subr.bf16.mxu0 0
    %918 = vmatpush1.bf16.msra.mxu0 0
    %919 = vmatprep.subr.bf16.mxu0 0
    %920 = vmatpush1.bf16.msra.mxu0 0
    %921 = vmatprep.subr.bf16.mxu0 0
    %922 = vmatpush1.bf16.msra.mxu0 0
    %923 = vmatprep.subr.bf16.mxu0 0
    %924 = vmatpush1.bf16.msra.mxu0 0
    %925 = vmatprep.subr.bf16.mxu0 0
    %926 = vmatpush1.bf16.msra.mxu0 0
    %927 = vmatprep.subr.bf16.mxu0 0
    %928 = vmatpush1.bf16.msra.mxu0 0
    %929 = vmatprep.subr.bf16.mxu0 0
    %930 = vmatpush1.bf16.msra.mxu0 0
    %931 = vmatprep.subr.bf16.mxu0 0
    %932 = vmatpush1.bf16.msra.mxu0 0
    %933 = vmatprep.mubr.bf16.mxu0 0
    %934 = vmatmul.mubr.bf16.gmra.mrb[0].mxu0 %v614
    %v935 = vpop.f32.mrb[0].mxu0
    %v936 = vadd.f32 %v893, %v935
    %v937 = vpop.f32.mrb[0].mxu0
    %v938 = vadd.f32 %v895, %v937
    %v939 = vpop.f32.mrb[0].mxu0
    %v940 = vadd.f32 %v897, %v939
    %v941 = vpop.f32.mrb[0].mxu0
    %v942 = vadd.f32 %v899, %v941
    %943 = vdwg.mxu0
    %944 = vmatprep.subr.mxu0 %v532
    %945 = vmatpush1.xpose.msra.mxu0 %v530
    %946 = vmatprep.subr.mxu0 %v536
    %947 = vmatpush1.xpose.msra.mxu0 %v534
    %948 = vmatprep.subr.mxu0 0.0
    %949 = vmatpush1.xpose.msra.mxu0 0.0
    %950 = vmatprep.subr.mxu0 0.0
    %951 = vmatpush1.xpose.msra.mxu0 0.0
    %952 = vmatprep.subr.mxu0 0.0
    %953 = vmatpush1.xpose.msra.mxu0 0.0
    %954 = vmatprep.subr.mxu0 0.0
    %955 = vmatpush1.xpose.msra.mxu0 0.0
    %956 = vmatprep.subr.mxu0 0.0
    %957 = vmatpush1.xpose.msra.mxu0 0.0
    %958 = vmatprep.subr.mxu0 0.0
    %959 = vmatpush1.xpose.msra.mxu0 0.0
    %960 = vmatprep.subr.mxu0 0.0
    %961 = vmatpush1.xpose.msra.mxu0 0.0
    %962 = vmatprep.subr.mxu0 0.0
    %963 = vmatpush1.xpose.msra.mxu0 0.0
    %964 = vmatprep.subr.mxu0 0.0
    %965 = vmatpush1.xpose.msra.mxu0 0.0
    %966 = vmatprep.subr.mxu0 0.0
    %967 = vmatpush1.xpose.msra.mxu0 0.0
    %968 = vmatprep.subr.mxu0 0.0
    %969 = vmatpush1.xpose.msra.mxu0 0.0
    %970 = vmatprep.subr.mxu0 0.0
    %971 = vmatpush1.xpose.msra.mxu0 0.0
    %972 = vmatprep.subr.mxu0 0.0
    %973 = vmatpush1.xpose.msra.mxu0 0.0
    %974 = vmatprep.subr.mxu0 0.0
    %975 = vmatpush1.xpose.msra.mxu0 0.0
    %976 = vmatprep.subr.mxu0 0.0
    %977 = vmatpush1.xpose.msra.mxu0 0.0
    %978 = vmatprep.subr.mxu0 0.0
    %979 = vmatpush1.xpose.msra.mxu0 0.0
    %980 = vmatprep.subr.mxu0 0.0
    %981 = vmatpush1.xpose.msra.mxu0 0.0
    %982 = vmatprep.subr.mxu0 0.0
    %983 = vmatpush1.xpose.msra.mxu0 0.0
    %984 = vmatprep.subr.mxu0 0.0
    %985 = vmatpush1.xpose.msra.mxu0 0.0
    %986 = vmatprep.subr.mxu0 0.0
    %987 = vmatpush1.xpose.msra.mxu0 0.0
    %988 = vmatprep.subr.mxu0 0.0
    %989 = vmatpush1.xpose.msra.mxu0 0.0
    %990 = vmatprep.subr.mxu0 0.0
    %991 = vmatpush1.xpose.msra.mxu0 0.0
    %992 = vmatprep.subr.mxu0 0.0
    %993 = vmatpush1.xpose.msra.mxu0 0.0
    %994 = vmatprep.subr.mxu0 0.0
    %995 = vmatpush1.xpose.msra.mxu0 0.0
    %996 = vmatprep.subr.mxu0 0.0
    %997 = vmatpush1.xpose.msra.mxu0 0.0
    %998 = vmatprep.subr.mxu0 0.0
    %999 = vmatpush1.xpose.msra.mxu0 0.0
    %1000 = vmatprep.subr.mxu0 0.0
    %1001 = vmatpush1.xpose.msra.mxu0 0.0
    %1002 = vmatprep.subr.mxu0 0.0
    %1003 = vmatpush1.xpose.msra.mxu0 0.0
    %1004 = vmatprep.subr.mxu0 0.0
    %1005 = vmatpush1.xpose.msra.mxu0 0.0
    %1006 = vmatprep.subr.mxu0 0.0
    %1007 = vmatpush1.xpose.msra.mxu0 0.0
    %1008 = vmatprep.mubr.f32.mxu0 %v321
    %1009 = vmatmul.mubr.f32.gmra.mrb[0].mxu0 %v319
    %v1010 = vpop.f32.mrb[0].mxu0
    %v1011 = vadd.f32 0.0, %v1010
    %v1012 = vpop.f32.mrb[0].mxu0
    %1013 = vdwg.mxu0
    %vm1014 = vcmask 130048
    %v1015 = vsel %vm1014, %v1011, -inf
    %1016 = vmax.xlane.f32.xlu0 %v1015
    %v1017 = vpop.xlane.xlu0 %1016
    %v1018 = vsub.f32 %v1011, %v1017
    %v1019 = vmul.f32 %v1018, 1.442695
    %v1020 = vpow.pop %v1019
    %v1021 = vsel %vm1014, %v1020, 0.0
    %1022 = vadd.xlane.f32.xlu0 %v1021
    %v1023 = vpop.xlane.xlu0 %1022
    %v1024 = vrcp.pop %v1023
    %v1025 = vmul.f32 %v1020, %v1024
    %v1026 = vld [vmem:[%s9] sm:$0xff]
    %vm1027 = vcmp.ge.u32.totalorder %v1026, 429496729
    %v1028 = vmul.f32 %v1025, 1.1111112
    %v1029 = vsel %vm1027, %v1028, 0.0
    %v1031 = vsel %vm1014, %v1029, 0
    %1033 = vmatprep.subr.mxu0 %v938
    %1034 = vmatpush1.msra.mxu0 %v936
    %1035 = vmatprep.subr.mxu0 %v942
    %1036 = vmatpush1.msra.mxu0 %v940
    %1037 = vmatprep.subr.mxu0 0.0
    %1038 = vmatpush1.msra.mxu0 0.0
    %1039 = vmatprep.subr.mxu0 0.0
    %1040 = vmatpush1.msra.mxu0 0.0
    %1041 = vmatprep.subr.mxu0 0.0
    %1042 = vmatpush1.msra.mxu0 0.0
    %1043 = vmatprep.subr.mxu0 0.0
    %1044 = vmatpush1.msra.mxu0 0.0
    %1045 = vmatprep.subr.mxu0 0.0
    %1046 = vmatpush1.msra.mxu0 0.0
    %1047 = vmatprep.subr.mxu0 0.0
    %1048 = vmatpush1.msra.mxu0 0.0
    %1049 = vmatprep.subr.mxu0 0.0
    %1050 = vmatpush1.msra.mxu0 0.0
    %1051 = vmatprep.subr.mxu0 0.0
    %1052 = vmatpush1.msra.mxu0 0.0
    %1053 = vmatprep.subr.mxu0 0.0
    %1054 = vmatpush1.msra.mxu0 0.0
    %1055 = vmatprep.subr.mxu0 0.0
    %1056 = vmatpush1.msra.mxu0 0.0
    %1057 = vmatprep.subr.mxu0 0.0
    %1058 = vmatpush1.msra.mxu0 0.0
    %1059 = vmatprep.subr.mxu0 0.0
    %1060 = vmatpush1.msra.mxu0 0.0
    %1061 = vmatprep.subr.mxu0 0.0
    %1062 = vmatpush1.msra.mxu0 0.0
    %1063 = vmatprep.subr.mxu0 0.0
    %1064 = vmatpush1.msra.mxu0 0.0
    %1065 = vmatprep.subr.mxu0 0.0
    %1066 = vmatpush1.msra.mxu0 0.0
    %1067 = vmatprep.subr.mxu0 0.0
    %1068 = vmatpush1.msra.mxu0 0.0
    %1069 = vmatprep.subr.mxu0 0.0
    %1070 = vmatpush1.msra.mxu0 0.0
    %1071 = vmatprep.subr.mxu0 0.0
    %1072 = vmatpush1.msra.mxu0 0.0
    %1073 = vmatprep.subr.mxu0 0.0
    %1074 = vmatpush1.msra.mxu0 0.0
    %1075 = vmatprep.subr.mxu0 0.0
    %1076 = vmatpush1.msra.mxu0 0.0
    %1077 = vmatprep.subr.mxu0 0.0
    %1078 = vmatpush1.msra.mxu0 0.0
    %1079 = vmatprep.subr.mxu0 0.0
    %1080 = vmatpush1.msra.mxu0 0.0
    %1081 = vmatprep.subr.mxu0 0.0
    %1082 = vmatpush1.msra.mxu0 0.0
    %1083 = vmatprep.subr.mxu0 0.0
    %1084 = vmatpush1.msra.mxu0 0.0
    %1085 = vmatprep.subr.mxu0 0.0
    %1086 = vmatpush1.msra.mxu0 0.0
    %1087 = vmatprep.subr.mxu0 0.0
    %1088 = vmatpush1.msra.mxu0 0.0
    %1089 = vmatprep.subr.mxu0 0.0
    %1090 = vmatpush1.msra.mxu0 0.0
    %1091 = vmatprep.subr.mxu0 0.0
    %1092 = vmatpush1.msra.mxu0 0.0
    %1093 = vmatprep.subr.mxu0 0.0
    %1094 = vmatpush1.msra.mxu0 0.0
    %1095 = vmatprep.subr.mxu0 0.0
    %1096 = vmatpush1.msra.mxu0 0.0
    %1097 = vmatprep.mubr.f32.mxu0 0.0
    %1098 = vmatmul.mubr.f32.gmra.mrb[0].mxu0 %v1031
    %v1099 = vpop.f32.mrb[0].mxu0
    %v1100 = vadd.f32 0.0, %v1099
    %v1101 = vpop.f32.mrb[0].mxu0
    %v1102 = vadd.f32 0.0, %v1101
    %1103 = vdwg.mxu0
    %1104 = vst [vmem:[#allocation13] sm:$0xff] %v1100
    %1105 = vst [vmem:[#allocation13 + $0x8] sm:$0xff] %v1102
    // Predicated region
    $region66: #{tpu_custom_call.1} parent=1 // pred_check
      _
    $region67: #{tpu_custom_call.1} parent=1 // pred_check_branch
      %1107 = sbr.rel (0) target = $region69
    $region68: #{tpu_custom_call.1} parent=1 // pred_region
      %s1109 = ssub.s32 256, 256
      %1110 = vsyncadd [#allocation4], %s1109
      %s1112 = sshll.u32 [#allocation13], 4
      %s1113 = int_to_ptr.vmem [resolvable:$true] %s1112
      %1115 = dma.vmem_to_hbm [thread:$0]  %s1113, 256, %s10, [#allocation4]
    $region69: #{tpu_custom_call.1} parent=1 // pred_fallthru
      _
    // Predicated region
    $region70: #{tpu_custom_call.1} parent=1 // pred_check
      _
    $region71: #{tpu_custom_call.1} parent=1 // pred_check_branch
      %1117 = sbr.rel (0) target = $region73
    $region72: #{tpu_custom_call.1} parent=1 // pred_region
      %1118 = dma.done [#allocation4], 256
    $region73: #{tpu_custom_call.1} parent=1 // pred_fallthru
      _
    %1119 = vsyncpa [#allocation3], 1
    %1120 = vsyncpa [#allocation6], 1
    %1121 = vsyncpa [#allocation9], 1
    %1122 = vsyncpa [#allocation12], 1
    %1123 = vsyncpa [#allocation4], 1

</llo_original>
